<compile_context>
chip_gen: v5e
topology: v5e:2x2
jax: 0.10.0
libtpu: 0.0.40
codegen_flags: <defaults>
</compile_context>

<pallas_src>
import math

import numpy as np
import jax
import jax.numpy as jnp
from jax.experimental import pallas as pl
from jax.experimental.pallas import tpu as pltpu


# --------------------------------------------------------------------------
# Pallas kernel: one GEMM + bias per grid step (a block of batch rows).
# --------------------------------------------------------------------------
def mwt1d_fold_kernel(x_ref, g_ref, b_ref, out_ref):
    # x_ref: (rows, D) compute_dtype; g_ref: (D, D) compute_dtype;
    # b_ref: (1, D) f32; out_ref: (rows, D) f32.
    acc = jnp.dot(x_ref[...], g_ref[...], preferred_element_type=jnp.float32)
    out_ref[...] = acc + b_ref[...]


# --------------------------------------------------------------------------
# Host-side constant folding (run once per (params, T, c, k) and reused).
# The composed operator is extracted exactly (float64) by pushing the
# identity basis (+ the zero vector, for the T_0-bias affine part) through
# the numpy reference of the module's forward.
# --------------------------------------------------------------------------
def prepare_mwt1d(params, T, c, k, *, compute_dtype=jnp.bfloat16):
    D = T * c * k

    basis = np.concatenate([np.eye(D, dtype=np.float64),
                            np.zeros((1, D), dtype=np.float64)], axis=0)
    outs = reference_forward(basis.reshape(D + 1, T, c, k), params)
    outs = outs.reshape(D + 1, D)
    bias = outs[-1]                       # forward(0)            -> affine part
    G = outs[:-1] - bias[None, :]         # forward(e_i) - bias   -> row i of G

    # Keep the folded operator comfortably inside scoped VMEM (it is
    # double-buffer allocated even though its block never changes).
    g_bytes = D * D * jnp.dtype(compute_dtype).itemsize
    if g_bytes > 8 * 1024 * 1024:
        # TODO(synk): large-D regime needs the structured (non-folded) kernel.
        raise NotImplementedError("folded MWT1d operator too large for VMEM")

    return dict(
        T=T, c=c, k=k, D=D,
        G=jnp.asarray(G, compute_dtype),
        bias=jnp.asarray(bias, jnp.float32).reshape(1, D),
        compute_dtype=compute_dtype,
    )


# --------------------------------------------------------------------------
# Wrapper: free reshape + (optional bf16 cast) + pallas_call.
# --------------------------------------------------------------------------
def mwt1d_forward(x, prep, *, num_row_blocks=1):
    """x: (B, T, c, k) -> (B, T, c, k), float32."""
    B, T, c, k = x.shape
    assert (T, c, k) == (prep["T"], prep["c"], prep["k"])
    D = prep["D"]

    # Free reshape: rows = batch, lanes = (t, c, k) flattened (D >= 128).
    x2d = jnp.asarray(x).reshape(B, D).astype(prep["compute_dtype"])

    # Grid selection: default 1 fat step (single-TensorCore v5e/v6e);
    # num_row_blocks=2 shards rows across the two v7x TensorCores when the
    # per-block row count stays a multiple of 8 (the (8,128) block rule).
    g = int(num_row_blocks)
    if g < 1 or B % g != 0 or (g > 1 and (B // g) % 8 != 0):
        g = 1
    rows = B // g

    out2d = pl.pallas_call(
        mwt1d_fold_kernel,
        grid=(g,),
        in_specs=[
            pl.BlockSpec((rows, D), lambda i: (i, 0)),   # x rows for this step
            pl.BlockSpec((D, D), lambda i: (0, 0)),      # folded operator G
            pl.BlockSpec((1, D), lambda i: (0, 0)),      # bias row
        ],
        out_specs=pl.BlockSpec((rows, D), lambda i: (i, 0)),
        out_shape=jax.ShapeDtypeStruct((B, D), jnp.float32),
        compiler_params=pltpu.CompilerParams(
            dimension_semantics=("parallel",),
            vmem_limit_bytes=32 * 1024 * 1024,
        ),
    )(x2d, prep["G"], prep["bias"])

    return out2d.reshape(B, T, c, k)


# --------------------------------------------------------------------------
# Deterministic parameter construction (shapes from MWT1d.__init__).
# --------------------------------------------------------------------------
def make_params(c, k, num_modes, seed=0):
    # TODO(synk): real get_filter('legendre', k) values not reproduced; the
    # (2k, k) filter buffers are deterministic random stand-ins of the right shape.
    rng = np.random.default_rng(seed)
    ck = c * k
    scale = 1.0 / (ck * ck)

    def cw():
        return scale * (rng.random((ck, ck, num_modes))
                        + 1j * rng.random((ck, ck, num_modes)))

    return dict(
        ec_s=rng.standard_normal((2 * k, k)) * 0.3,
        ec_d=rng.standard_normal((2 * k, k)) * 0.3,
        rc_e=rng.standard_normal((2 * k, k)) * 0.3,
        rc_o=rng.standard_normal((2 * k, k)) * 0.3,
        t0_w=rng.uniform(-1.0, 1.0, (k, k)) / np.sqrt(k),
        t0_b=rng.uniform(-1.0, 1.0, (k,)) / np.sqrt(k),
        wA=cw(), wB=cw(), wC=cw(),
        num_modes=num_modes,
    )


# --------------------------------------------------------------------------
# Pure numpy (float64) reference — mirrors the torch forward exactly.
# --------------------------------------------------------------------------
def reference_forward(x, p):
    x = np.asarray(x, np.float64)
    B, T, c, k = x.shape
    nl = 2 ** int(math.ceil(math.log2(T)))
    if nl != T:                                   # wrap-pad (matches pad())
        x = np.concatenate([x, x[:, : nl - T]], axis=1)

    def feb(z, w):
        Bz, Nh, cz, kz = z.shape
        zz = z.reshape(Bz, Nh, cz * kz).transpose(0, 2, 1)
        zf = np.fft.rfft(zz, axis=-1)
        ll = min(p["num_modes"], Nh // 2 + 1)
        out = np.zeros((Bz, cz * kz, Nh // 2 + 1), dtype=np.complex128)
        out[:, :, :ll] = np.einsum('bix,iox->box', zf[:, :, :ll], w[:, :, :ll])
        y = np.fft.irfft(out, n=Nh, axis=-1)
        return y.transpose(0, 2, 1).reshape(Bz, Nh, cz, kz)

    xa = np.concatenate([x[:, ::2], x[:, 1::2]], axis=-1)
    d = xa @ p["ec_d"]
    s = xa @ p["ec_s"]
    ud = feb(d, p["wA"]) + feb(s, p["wB"])
    us = feb(d, p["wC"])
    xL = s @ p["t0_w"].T + p["t0_b"]
    x2 = xL + us
    xc = np.concatenate([x2, ud], axis=-1)
    x_e = xc @ p["rc_e"]
    x_o = xc @ p["rc_o"]
    Nh = x2.shape[1]
    out = np.zeros((B, 2 * Nh, c, k))
    out[:, ::2] = x_e
    out[:, 1::2] = x_o
    return out[:, :T]


if __name__ == "__main__":
    c, k, num_modes = 4, 3, 16          # module defaults
    T = 16
    params = make_params(c, k, num_modes, seed=0)

    # 1) f32 operands, tight tolerance: proves the fold + kernel are exact.
    B = 2
    x = jax.random.normal(jax.random.PRNGKey(0), (B, T, c, k), dtype=jnp.float32)
    prep_f32 = prepare_mwt1d(params, T, c, k, compute_dtype=jnp.float32)
    out = jax.block_until_ready(mwt1d_forward(x, prep_f32))
    ref = reference_forward(np.asarray(x, np.float64), params)
    np.testing.assert_allclose(np.asarray(out), ref, rtol=5e-3, atol=5e-4)
    assert out.shape == (B, T, c, k)

    # 2) bf16 operands (the performance configuration) — looser, bf16-level
    #    tolerance as flagged by the review's precision concern.
    prep_bf16 = prepare_mwt1d(params, T, c, k, compute_dtype=jnp.bfloat16)
    out_bf16 = jax.block_until_ready(mwt1d_forward(x, prep_bf16))
    np.testing.assert_allclose(np.asarray(out_bf16), ref, rtol=2e-2, atol=1e-2)

    # 3) larger batch with two row-blocks ('parallel' grid; maps to the two
    #    TensorCores on v7x, harmless single-core loop elsewhere).
    B2 = 16
    x2 = jax.random.normal(jax.random.PRNGKey(0), (B2, T, c, k), dtype=jnp.float32)
    out2 = jax.block_until_ready(mwt1d_forward(x2, prep_bf16, num_row_blocks=2))
    ref2 = reference_forward(np.asarray(x2, np.float64), params)
    np.testing.assert_allclose(np.asarray(out2), ref2, rtol=2e-2, atol=1e-2)

    print("KERNEL_OK")
</pallas_src>

<mosaic_0001>
module attributes {stable_mosaic.version = 11 : i64} {
  func.func @mwt1d_fold_kernel(%arg0: i32, %arg1: memref<2x192xf32, #tpu.memory_space<vmem>>, %arg2: memref<192x192xf32, #tpu.memory_space<vmem>>, %arg3: memref<1x192xf32, #tpu.memory_space<vmem>>, %arg4: memref<2x192xf32, #tpu.memory_space<vmem>>) attributes {dimension_semantics = [#tpu.dimension_semantics<parallel>], iteration_bounds = array<i64: 1>, scalar_prefetch = 0 : i64, scratch_operands = 0 : i64, tpu.core_type = #tpu.core_type<tc>, window_params = [{transform_indices = @transform_0, window_bounds = array<i64: 2, 192>}, {pipeline_mode = #tpu.pipeline_mode<synchronous>, transform_indices = @transform_1, window_bounds = array<i64: 192, 192>}, {pipeline_mode = #tpu.pipeline_mode<synchronous>, transform_indices = @transform_2, window_bounds = array<i64: 1, 192>}, {transform_indices = @transform_3, window_bounds = array<i64: 2, 192>}]} {
    %c0 = arith.constant 0 : index
    %c0_0 = arith.constant 0 : index
    %0 = vector.load %arg1[%c0, %c0_0] : memref<2x192xf32, #tpu.memory_space<vmem>>, vector<2x192xf32>
    %c0_1 = arith.constant 0 : index
    %c0_2 = arith.constant 0 : index
    %1 = vector.load %arg2[%c0_1, %c0_2] : memref<192x192xf32, #tpu.memory_space<vmem>>, vector<192x192xf32>
    %cst = arith.constant dense<0.000000e+00> : vector<2x192xf32>
    %2 = tpu.matmul %0, %1, %cst {dimension_numbers = #tpu.dot_dimension_numbers<[1], [0], [0], [1], [0, 0, 1, 1], [], []>} : vector<2x192xf32>, vector<192x192xf32>, vector<2x192xf32> -> vector<2x192xf32>
    %c0_3 = arith.constant 0 : index
    %c0_4 = arith.constant 0 : index
    %3 = vector.load %arg3[%c0_3, %c0_4] : memref<1x192xf32, #tpu.memory_space<vmem>>, vector<1x192xf32>
    %4 = vector.broadcast %3 : vector<1x192xf32> to vector<2x192xf32>
    %5 = arith.addf %2, %4 : vector<2x192xf32>
    %c0_5 = arith.constant 0 : index
    %c0_6 = arith.constant 0 : index
    %6 = vector.load %arg4[%c0_5, %c0_6] : memref<2x192xf32, #tpu.memory_space<vmem>>, vector<2x192xf32>
    tpu.vector_store %arg4[%c0_5, %c0_6], %5 {strides = array<i32>} : memref<2x192xf32, #tpu.memory_space<vmem>>, vector<2x192xf32>,
    return
  }
  func.func @transform_0(%arg0: i32) -> (i32, i32) {
    %c0_i32 = arith.constant 0 : i32
    %c0_i32_0 = arith.constant 0 : i32
    return %arg0, %c0_i32 : i32, i32
  }
  func.func @transform_1(%arg0: i32) -> (i32, i32) {
    %c0_i32 = arith.constant 0 : i32
    %c0_i32_0 = arith.constant 0 : i32
    %c0_i32_1 = arith.constant 0 : i32
    return %c0_i32, %c0_i32_0 : i32, i32
  }
  func.func @transform_2(%arg0: i32) -> (i32, i32) {
    %c0_i32 = arith.constant 0 : i32
    %c0_i32_0 = arith.constant 0 : i32
    %c0_i32_1 = arith.constant 0 : i32
    return %c0_i32, %c0_i32_0 : i32, i32
  }
  func.func @transform_3(%arg0: i32) -> (i32, i32) {
    %c0_i32 = arith.constant 0 : i32
    %c0_i32_0 = arith.constant 0 : i32
    return %arg0, %c0_i32 : i32, i32
  }
}

</mosaic_0001>

<llo_original>
// kernel: tpu_custom_call.1
$region0: #{tpu_custom_call.1}
  #allocation0 [shape = 'u32[]', space=smem, size = 0x4, offset = 0x4, fixed_abs, tag = 'smem constant byte address 0x4 - core index']
  #allocation1 [shape = 'u32[72,128]{1,0:T(1,128)}', space=vmem, size = 0x9000, scoped, tag = 'internal scratch']
  %s0 = inlined_call_operand.hbm [shape: f32[2,192], index: 0, kind: input, shape index: {}]
  %s1 = inlined_call_operand.hbm [shape: f32[192,192], index: 1, kind: input, shape index: {}]
  %s2 = inlined_call_operand.hbm [shape: f32[1,192], index: 2, kind: input, shape index: {}]
  %s3 = inlined_call_operand.hbm [shape: f32[2,192], index: 3, kind: output, shape index: {}]
  %s4 = sld [smem:[#allocation0]]
  $region34: #{tpu_custom_call.1} parent=0
    _
  %s6 = ssub.s32 1, %s4
  %s7 = scalar_select 0, %s6, %s4
  $region1: #{tpu_custom_call.1} parent=0
    #allocation2 [shape = 'u8[2048]{0}', space=vmem, size = 0x800, scoped, tag = 'input window, operand 0, single buffered']
    #allocation3 [shape = 's32[1]{0}', space=sflag, size = 0x4, scoped, tag = 'scoped memory for tpu_custom_call.1']
    #allocation4 [shape = 's32[1]{0}', space=sflag, size = 0x4, scoped, tag = 'scoped memory for tpu_custom_call.1']
    #allocation5 [shape = 'u8[196608]{0}', space=vmem, size = 0x30000, scoped, tag = 'input window, operand 1, single buffered']
    #allocation6 [shape = 's32[1]{0}', space=sflag, size = 0x4, scoped, tag = 'scoped memory for tpu_custom_call.1']
    #allocation7 [shape = 'u8[1024]{0}', space=vmem, size = 0x400, scoped, tag = 'input window, operand 2, single buffered']
    #allocation8 [shape = 'u8[2048]{0}', space=vmem, size = 0x800, scoped, tag = 'output window, operand 0, single buffered']
    %8 = vsyncpa [#allocation3], 0
    %9 = vsyncpa [#allocation6], 0
    %10 = vsyncpa [#allocation4], 0
    // Predicated region
    $region2: #{tpu_custom_call.1} parent=1 // pred_check
      _
    $region3: #{tpu_custom_call.1} parent=1 // pred_check_branch
      %12 = sbr.rel (0) target = $region5
    $region4: #{tpu_custom_call.1} parent=1 // pred_region
      %14 = vsyncadd [#allocation3], 0
      %s16 = sshll.u32 %s0, 4
      %s17 = int_to_ptr.hbm [resolvable:$true] %s16
      %s18 = sshll.u32 [#allocation2], 4
      %s19 = int_to_ptr.vmem [resolvable:$true] %s18
      %21 = dma.hbm_to_vmem [thread:$0]  %s17, 64, %s19, [#allocation3]
    $region5: #{tpu_custom_call.1} parent=1 // pred_fallthru
      _
    // Predicated region
    $region6: #{tpu_custom_call.1} parent=1 // pred_check
      _
    $region7: #{tpu_custom_call.1} parent=1 // pred_check_branch
      %23 = sbr.rel (0) target = $region9
    $region8: #{tpu_custom_call.1} parent=1 // pred_region
      %25 = vsyncadd [#allocation6], 0
      %s26 = sshll.u32 %s1, 4
      %s27 = int_to_ptr.hbm [resolvable:$true] %s26
      %s28 = sshll.u32 [#allocation5], 4
      %s29 = int_to_ptr.vmem [resolvable:$true] %s28
      %34 = dma.hbm_to_vmem [thread:$0]  %s27, 6144, %s29, [#allocation6], 256, 256, 16
    $region9: #{tpu_custom_call.1} parent=1 // pred_fallthru
      _
    // Predicated region
    $region10: #{tpu_custom_call.1} parent=1 // pred_check
      _
    $region11: #{tpu_custom_call.1} parent=1 // pred_check_branch
      %36 = sbr.rel (0) target = $region13
    $region12: #{tpu_custom_call.1} parent=1 // pred_region
      %38 = vsyncadd [#allocation6], 0
      %s40 = sshll.u32 %s2, 4
      %s41 = int_to_ptr.hbm [resolvable:$true] %s40
      %s42 = sshll.u32 [#allocation7], 4
      %s43 = int_to_ptr.vmem [resolvable:$true] %s42
      %45 = dma.hbm_to_vmem [thread:$0]  %s41, 32, %s43, [#allocation6]
    $region13: #{tpu_custom_call.1} parent=1 // pred_fallthru
      _
    // Predicated region
    $region14: #{tpu_custom_call.1} parent=1 // pred_check
      _
    $region15: #{tpu_custom_call.1} parent=1 // pred_check_branch
      %47 = sbr.rel (0) target = $region17
    $region16: #{tpu_custom_call.1} parent=1 // pred_region
      %49 = dma.done [#allocation3], 64
    $region17: #{tpu_custom_call.1} parent=1 // pred_fallthru
      _
    // Predicated region
    $region18: #{tpu_custom_call.1} parent=1 // pred_check
      _
    $region19: #{tpu_custom_call.1} parent=1 // pred_check_branch
      %51 = sbr.rel (0) target = $region21
    $region20: #{tpu_custom_call.1} parent=1 // pred_region
      %53 = dma.done [#allocation6], 6144
    $region21: #{tpu_custom_call.1} parent=1 // pred_fallthru
      _
    // Predicated region
    $region22: #{tpu_custom_call.1} parent=1 // pred_check
      _
    $region23: #{tpu_custom_call.1} parent=1 // pred_check_branch
      %55 = sbr.rel (0) target = $region25
    $region24: #{tpu_custom_call.1} parent=1 // pred_region
      %57 = dma.done [#allocation6], 32
    $region25: #{tpu_custom_call.1} parent=1 // pred_fallthru
      _
    %v58 = vld [vmem:[#allocation2] sm:$0xf]
    %v59 = vld [vmem:[#allocation5] sm:$0xff]
    %v60 = vld [vmem:[#allocation5 + $0x8] sm:$0xff]
    %v61 = vld [vmem:[#allocation5 + $0x10] sm:$0xff]
    %v62 = vld [vmem:[#allocation5 + $0x18] sm:$0xff]
    %v63 = vld [vmem:[#allocation5 + $0x20] sm:$0xff]
    %v64 = vld [vmem:[#allocation5 + $0x28] sm:$0xff]
    %v65 = vld [vmem:[#allocation5 + $0x30] sm:$0xff]
    %v66 = vld [vmem:[#allocation5 + $0x38] sm:$0xff]
    %v67 = vld [vmem:[#allocation5 + $0x40] sm:$0xff]
    %v68 = vld [vmem:[#allocation5 + $0x48] sm:$0xff]
    %v69 = vld [vmem:[#allocation5 + $0x50] sm:$0xff]
    %v70 = vld [vmem:[#allocation5 + $0x58] sm:$0xff]
    %v71 = vld [vmem:[#allocation5 + $0x60] sm:$0xff]
    %v72 = vld [vmem:[#allocation5 + $0x68] sm:$0xff]
    %v73 = vld [vmem:[#allocation5 + $0x70] sm:$0xff]
    %v74 = vld [vmem:[#allocation5 + $0x78] sm:$0xff]
    %v75 = vld [vmem:[#allocation5 + $0x80] sm:$0xff]
    %v76 = vld [vmem:[#allocation5 + $0x88] sm:$0xff]
    %v77 = vld [vmem:[#allocation5 + $0x90] sm:$0xff]
    %v78 = vld [vmem:[#allocation5 + $0x98] sm:$0xff]
    %v79 = vld [vmem:[#allocation5 + $0xa0] sm:$0xff]
    %v80 = vld [vmem:[#allocation5 + $0xa8] sm:$0xff]
    %v81 = vld [vmem:[#allocation5 + $0xb0] sm:$0xff]
    %v82 = vld [vmem:[#allocation5 + $0xb8] sm:$0xff]
    %v83 = vld [vmem:[#allocation5 + $0xc0] sm:$0xff]
    %v84 = vld [vmem:[#allocation5 + $0xc8] sm:$0xff]
    %v85 = vld [vmem:[#allocation5 + $0xd0] sm:$0xff]
    %v86 = vld [vmem:[#allocation5 + $0xd8] sm:$0xff]
    %v87 = vld [vmem:[#allocation5 + $0xe0] sm:$0xff]
    %v88 = vld [vmem:[#allocation5 + $0xe8] sm:$0xff]
    %v89 = vld [vmem:[#allocation5 + $0xf0] sm:$0xff]
    %v90 = vld [vmem:[#allocation5 + $0xf8] sm:$0xff]
    %v91 = vld [vmem:[#allocation5 + $0x100] sm:$0xff]
    %v92 = vld [vmem:[#allocation5 + $0x108] sm:$0xff]
    %v93 = vld [vmem:[#allocation5 + $0x110] sm:$0xff]
    %v94 = vld [vmem:[#allocation5 + $0x118] sm:$0xff]
    %v95 = vld [vmem:[#allocation5 + $0x120] sm:$0xff]
    %v96 = vld [vmem:[#allocation5 + $0x128] sm:$0xff]
    %v97 = vld [vmem:[#allocation5 + $0x130] sm:$0xff]
    %v98 = vld [vmem:[#allocation5 + $0x138] sm:$0xff]
    %v99 = vld [vmem:[#allocation5 + $0x140] sm:$0xff]
    %v100 = vld [vmem:[#allocation5 + $0x148] sm:$0xff]
    %v101 = vld [vmem:[#allocation5 + $0x150] sm:$0xff]
    %v102 = vld [vmem:[#allocation5 + $0x158] sm:$0xff]
    %v103 = vld [vmem:[#allocation5 + $0x160] sm:$0xff]
    %v104 = vld [vmem:[#allocation5 + $0x168] sm:$0xff]
    %v105 = vld [vmem:[#allocation5 + $0x170] sm:$0xff]
    %v106 = vld [vmem:[#allocation5 + $0x178] sm:$0xff]
    %v107 = vld [vmem:[#allocation7] sm:$0x3]
    %v109 = vperm.slane %v107, 0
    %v110 = vperm.slane %v107, 1
    %114 = vst [vmem:[#allocation1] ss:$4 sm:$0xff] %v58
    %v115 = vld.sshfl [vmem:[#allocation1] sm:$0xff pattern:$0x73625140]
    %v116 = vld.sshfl [vmem:[#allocation1 + $0x8] sm:$0xff pattern:$0x73625140]
    %vm118 = vcmask 523264
    %v119 = vsel %vm118, %v116, 0
    %121 = vmatpush.msra.mxu0 %v89
    %122 = vmatpush.msra.mxu0 %v87
    %123 = vmatpush.msra.mxu0 %v85
    %124 = vmatpush.msra.mxu0 %v83
    %125 = vmatpush.msra.mxu0 %v81
    %126 = vmatpush.msra.mxu0 %v79
    %127 = vmatpush.msra.mxu0 %v77
    %128 = vmatpush.msra.mxu0 %v75
    %129 = vmatpush.msra.mxu0 %v73
    %130 = vmatpush.msra.mxu0 %v71
    %131 = vmatpush.msra.mxu0 %v69
    %132 = vmatpush.msra.mxu0 %v67
    %133 = vmatpush.msra.mxu0 %v65
    %134 = vmatpush.msra.mxu0 %v63
    %135 = vmatpush.msra.mxu0 %v61
    %136 = vmatpush.msra.mxu0 %v59
    %137 = vmatmul.f32.gmra.mxu0 %v115
    %v138 = vpop.f32.mrf.mxu0
    %v139 = vadd.f32 %v109, %v138
    %140 = vdwg.mxu0
    %141 = vmatpush.msra.mxu0 0.0
    %142 = vmatpush.msra.mxu0 0.0
    %143 = vmatpush.msra.mxu0 0.0
    %144 = vmatpush.msra.mxu0 0.0
    %145 = vmatpush.msra.mxu0 0.0
    %146 = vmatpush.msra.mxu0 0.0
    %147 = vmatpush.msra.mxu0 0.0
    %148 = vmatpush.msra.mxu0 0.0
    %149 = vmatpush.msra.mxu0 %v105
    %150 = vmatpush.msra.mxu0 %v103
    %151 = vmatpush.msra.mxu0 %v101
    %152 = vmatpush.msra.mxu0 %v99
    %153 = vmatpush.msra.mxu0 %v97
    %154 = vmatpush.msra.mxu0 %v95
    %155 = vmatpush.msra.mxu0 %v93
    %156 = vmatpush.msra.mxu0 %v91
    %157 = vmatmul.f32.gmra.mxu0 %v119
    %v158 = vpop.f32.mrf.mxu0
    %v159 = vadd.f32 %v139, %v158
    %160 = vdwg.mxu0
    %161 = vmatpush.msra.mxu0 %v90
    %162 = vmatpush.msra.mxu0 %v88
    %163 = vmatpush.msra.mxu0 %v86
    %164 = vmatpush.msra.mxu0 %v84
    %165 = vmatpush.msra.mxu0 %v82
    %166 = vmatpush.msra.mxu0 %v80
    %167 = vmatpush.msra.mxu0 %v78
    %168 = vmatpush.msra.mxu0 %v76
    %169 = vmatpush.msra.mxu0 %v74
    %170 = vmatpush.msra.mxu0 %v72
    %171 = vmatpush.msra.mxu0 %v70
    %172 = vmatpush.msra.mxu0 %v68
    %173 = vmatpush.msra.mxu0 %v66
    %174 = vmatpush.msra.mxu0 %v64
    %175 = vmatpush.msra.mxu0 %v62
    %176 = vmatpush.msra.mxu0 %v60
    %177 = vmatmul.f32.gmra.mxu0 %v115
    %v178 = vpop.f32.mrf.mxu0
    %v179 = vadd.f32 %v110, %v178
    %180 = vdwg.mxu0
    %181 = vmatpush.msra.mxu0 0.0
    %182 = vmatpush.msra.mxu0 0.0
    %183 = vmatpush.msra.mxu0 0.0
    %184 = vmatpush.msra.mxu0 0.0
    %185 = vmatpush.msra.mxu0 0.0
    %186 = vmatpush.msra.mxu0 0.0
    %187 = vmatpush.msra.mxu0 0.0
    %188 = vmatpush.msra.mxu0 0.0
    %189 = vmatpush.msra.mxu0 %v106
    %190 = vmatpush.msra.mxu0 %v104
    %191 = vmatpush.msra.mxu0 %v102
    %192 = vmatpush.msra.mxu0 %v100
    %193 = vmatpush.msra.mxu0 %v98
    %194 = vmatpush.msra.mxu0 %v96
    %195 = vmatpush.msra.mxu0 %v94
    %196 = vmatpush.msra.mxu0 %v92
    %197 = vmatmul.f32.gmra.mxu0 %v119
    %v198 = vpop.f32.mrf.mxu0
    %v199 = vadd.f32 %v179, %v198
    %200 = vdwg.mxu0
    %v203 = vrot.slane %v199, 6
    %vm204 = vcmask 1041408
    %v205 = vsel %vm204, %v159, %v203
    %vm207 = vcmask 519170
    %vm208 = vmor %vm207, %vm204
    %209 = vst.msk [vmem:[#allocation8] sm:$0xf] %vm208, %v205
    // Predicated region
    $region26: #{tpu_custom_call.1} parent=1 // pred_check
      _
    $region27: #{tpu_custom_call.1} parent=1 // pred_check_branch
      %211 = sbr.rel (0) target = $region29
    $region28: #{tpu_custom_call.1} parent=1 // pred_region
      %213 = vsyncadd [#allocation4], 0
      %s215 = sshll.u32 [#allocation8], 4
      %s216 = int_to_ptr.vmem [resolvable:$true] %s215
      %s217 = sshll.u32 %s3, 4
      %s218 = int_to_ptr.hbm [resolvable:$true] %s217
      %220 = dma.vmem_to_hbm [thread:$0]  %s216, 64, %s218, [#allocation4]
    $region29: #{tpu_custom_call.1} parent=1 // pred_fallthru
      _
    // Predicated region
    $region30: #{tpu_custom_call.1} parent=1 // pred_check
      _
    $region31: #{tpu_custom_call.1} parent=1 // pred_check_branch
      %222 = sbr.rel (0) target = $region33
    $region32: #{tpu_custom_call.1} parent=1 // pred_region
      %224 = dma.done [#allocation4], 64
    $region33: #{tpu_custom_call.1} parent=1 // pred_fallthru
      _
    %225 = vsyncpa [#allocation3], 1
    %226 = vsyncpa [#allocation6], 1
    %227 = vsyncpa [#allocation4], 1

</llo_original>
